<compile_context>
chip_gen: v7x
topology: tpu7x:2x2x1
jax: 0.10.0
libtpu: 0.0.40
codegen_flags: <defaults>
</compile_context>

<pallas_src>
import jax
import jax.numpy as jnp
from jax import lax
from jax.experimental import pallas as pl
from jax.experimental.pallas import tpu as pltpu

LEAKY_SLOPE = 0.01   # nn.LeakyReLU default
BN_EPS = 1e-5        # nn.BatchNorm2d default
KH = KW = 3          # kernel_size=3, dilation=1, stride=1 -> 'same' zero pad of 1


def _toeplitz_weight(w, F, matmul_dtype):
    """Fold the 3x3 conv (and its 'same' feature padding) into one block-Toeplitz
    matrix per time tap:  wb[kh, (f+kw-1)*Cin + ci, f*Cout + co] = w[kh, kw, ci, co],
    dropping taps that would read the zero feature padding."""
    KH_, KW_, Cin, Cout = w.shape
    wb = jnp.zeros((KH_, F * Cin, F * Cout), dtype=jnp.float32)
    for f in range(F):
        kw_lo = max(0, 1 - f)            # drop taps reading the left feature pad
        kw_hi = min(KW_ - 1, F - f)      # drop taps reading the right feature pad
        blk = w[:, kw_lo:kw_hi + 1].reshape(KH_, (kw_hi - kw_lo + 1) * Cin, Cout)
        row0 = (f + kw_lo - 1) * Cin
        wb = wb.at[:, row0:row0 + blk.shape[1], f * Cout:(f + 1) * Cout].set(
            blk.astype(jnp.float32))
    return wb.astype(matmul_dtype)


def cnn_block_forward(x, w, b, gamma, beta, *, matmul_dtype=jnp.bfloat16):
    B, T, F, Cin = x.shape
    Cout = w.shape[-1]
    assert T % 2 == 0 and F % 2 == 0
    FC_in = F * Cin                     # lane width of packed input
    FC = F * Cout                       # lane width of packed pre-BN activation
    FC_out = (F // 2) * Cout            # lane width of packed output

    x_packed = x.reshape(B, T, FC_in)                    # free, lane-dense view
    wb = _toeplitz_weight(w, F, matmul_dtype)            # (KH, F*Cin, F*Cout)
    bias_row = jnp.tile(b.astype(jnp.float32), F).reshape(1, FC)

    # ------------- pass A: conv + LeakyReLU + partial BN statistics -------------
    def pass_a_kernel(x_ref, wb_ref, bias_ref, y_ref, sum_ref, sq_ref, xp_ref):
        step = pl.program_id(0)

        @pl.when(step == 0)
        def _init():
            # zero time-halo rows once ('same' time padding); never overwritten
            xp_ref[pl.ds(0, 1), :] = jnp.zeros((1, FC_in), jnp.float32)
            xp_ref[pl.ds(T + 1, 1), :] = jnp.zeros((1, FC_in), jnp.float32)
            sum_ref[...] = jnp.zeros_like(sum_ref)
            sq_ref[...] = jnp.zeros_like(sq_ref)

        # interior of the time-padded tile
        xp_ref[pl.ds(1, T), :] = x_ref[0].astype(jnp.float32)

        # conv: 3 time taps, each a lane-dense MXU GEMM (bf16 operands, f32 acc)
        acc = jnp.zeros((T, FC), jnp.float32)
        for kh in range(KH):
            lhs = xp_ref[pl.ds(kh, T), :].astype(matmul_dtype)
            acc = acc + jnp.dot(lhs, wb_ref[kh],
                                preferred_element_type=jnp.float32)
        acc = acc + bias_ref[...]                        # conv bias
        y = jnp.where(acc > 0, acc, LEAKY_SLOPE * acc)   # LeakyReLU (f32)

        y_ref[...] = y.reshape(1, T, FC)
        # per-(feature, channel) partial sums, accumulated across the batch grid
        sum_ref[...] = sum_ref[...] + jnp.sum(y, axis=0, keepdims=True)
        sq_ref[...] = sq_ref[...] + jnp.sum(y * y, axis=0, keepdims=True)

    y_pre, csum, csq = pl.pallas_call(
        pass_a_kernel,
        out_shape=(
            jax.ShapeDtypeStruct((B, T, FC), jnp.float32),
            jax.ShapeDtypeStruct((1, FC), jnp.float32),
            jax.ShapeDtypeStruct((1, FC), jnp.float32),
        ),
        grid=(B,),
        in_specs=[
            pl.BlockSpec((1, T, FC_in), lambda i: (i, 0, 0)),
            pl.BlockSpec((KH, F * Cin, FC), lambda i: (0, 0, 0)),
            pl.BlockSpec((1, FC), lambda i: (0, 0)),
        ],
        out_specs=(
            pl.BlockSpec((1, T, FC), lambda i: (i, 0, 0)),
            pl.BlockSpec((1, FC), lambda i: (0, 0)),
            pl.BlockSpec((1, FC), lambda i: (0, 0)),
        ),
        scratch_shapes=[pltpu.VMEM((T + 2, FC_in), jnp.float32)],
        compiler_params=pltpu.CompilerParams(
            dimension_semantics=("arbitrary",),   # BN stats accumulate across batch
            vmem_limit_bytes=32 * 1024 * 1024,
        ),
    )(x_packed, wb, bias_row)

    # ---- tiny per-channel glue: fold batch stats into BN scale/shift (O(Cout)) ----
    count = jnp.float32(B * T * F)
    ch_sum = jnp.sum(csum.reshape(F, Cout), axis=0)
    ch_sq = jnp.sum(csq.reshape(F, Cout), axis=0)
    mean = ch_sum / count
    var = ch_sq / count - mean * mean                    # biased (training-mode BN)
    scale_c = gamma.astype(jnp.float32) * lax.rsqrt(var + BN_EPS)
    shift_c = beta.astype(jnp.float32) - mean * scale_c
    scale_row = jnp.tile(scale_c, F).reshape(1, FC)
    shift_row = jnp.tile(shift_c, F).reshape(1, FC)

    # ----------------- pass B: normalize + affine + 2x2 max-pool -----------------
    def pass_b_kernel(y_ref, scale_ref, shift_ref, o_ref):
        z = y_ref[0] * scale_ref[...] + shift_ref[...]   # BN (f32), lane-dense FMA
        z = z.reshape(T // 2, 2, F // 2, 2, Cout)        # pool in registers
        z = jnp.max(z, axis=3)                           # feature pairs
        z = jnp.max(z, axis=1)                           # time pairs
        o_ref[...] = z.reshape(1, T // 2, FC_out).astype(o_ref.dtype)

    out_packed = pl.pallas_call(
        pass_b_kernel,
        out_shape=jax.ShapeDtypeStruct((B, T // 2, FC_out), x.dtype),
        grid=(B,),
        in_specs=[
            pl.BlockSpec((1, T, FC), lambda i: (i, 0, 0)),
            pl.BlockSpec((1, FC), lambda i: (0, 0)),
            pl.BlockSpec((1, FC), lambda i: (0, 0)),
        ],
        out_specs=pl.BlockSpec((1, T // 2, FC_out), lambda i: (i, 0, 0)),
        compiler_params=pltpu.CompilerParams(
            dimension_semantics=("parallel",),
            vmem_limit_bytes=32 * 1024 * 1024,
        ),
    )(y_pre, scale_row, shift_row)

    return out_packed.reshape(B, T // 2, F // 2, Cout)


def cnn_block_reference(x, w, b, gamma, beta):
    """Pure-JAX reference of the same forward pass (correctness check)."""
    y = lax.conv_general_dilated(
        x, w, window_strides=(1, 1), padding="SAME",
        dimension_numbers=("NHWC", "HWIO", "NHWC"))
    y = y + b.reshape(1, 1, 1, -1)
    y = jnp.where(y > 0, y, LEAKY_SLOPE * y)
    mean = jnp.mean(y, axis=(0, 1, 2), keepdims=True)
    var = jnp.mean((y - mean) ** 2, axis=(0, 1, 2), keepdims=True)
    y = (y - mean) * lax.rsqrt(var + BN_EPS)
    y = y * gamma.reshape(1, 1, 1, -1) + beta.reshape(1, 1, 1, -1)
    B, T, F, C = y.shape
    return jnp.max(y.reshape(B, T // 2, 2, F // 2, 2, C), axis=(2, 4))


if __name__ == "__main__":
    B, T, F, Cin, Cout = 2, 16, 16, 4, 8

    key = jax.random.PRNGKey(0)
    kx, kw_, kb, kg, kbt = jax.random.split(key, 5)
    x = jax.random.normal(kx, (B, T, F, Cin), dtype=jnp.float32)
    w = 0.2 * jax.random.normal(kw_, (KH, KW, Cin, Cout), dtype=jnp.float32)
    b = 0.1 * jax.random.normal(kb, (Cout,), dtype=jnp.float32)
    gamma = 1.0 + 0.1 * jax.random.normal(kg, (Cout,), dtype=jnp.float32)
    beta = 0.1 * jax.random.normal(kbt, (Cout,), dtype=jnp.float32)

    out = jax.block_until_ready(cnn_block_forward(x, w, b, gamma, beta))
    ref = jax.block_until_ready(cnn_block_reference(x, w, b, gamma, beta))

    assert out.shape == (B, T // 2, F // 2, Cout), out.shape
    assert bool(jnp.all(jnp.isfinite(out)))
    err = float(jnp.max(jnp.abs(out - ref)))
    assert err < 5e-2, f"max abs err too large: {err}"
    print("KERNEL_OK")
</pallas_src>

<mosaic_0001>
module attributes {stable_mosaic.version = 11 : i64} {
  func.func @pass_a_kernel(%arg0: i32, %arg1: memref<1x16x64xf32, #tpu.memory_space<vmem>>, %arg2: memref<3x64x128xbf16, #tpu.memory_space<vmem>>, %arg3: memref<1x128xf32, #tpu.memory_space<vmem>>, %arg4: memref<1x16x128xf32, #tpu.memory_space<vmem>>, %arg5: memref<1x128xf32, #tpu.memory_space<vmem>>, %arg6: memref<1x128xf32, #tpu.memory_space<vmem>>, %arg7: memref<18x64xf32, #tpu.memory_space<vmem>>) attributes {dimension_semantics = [#tpu.dimension_semantics<arbitrary>], iteration_bounds = array<i64: 2>, scalar_prefetch = 0 : i64, scratch_operands = 1 : i64, tpu.core_type = #tpu.core_type<tc>, window_params = [{transform_indices = @transform_0, window_bounds = array<i64: 1, 16, 64>}, {pipeline_mode = #tpu.pipeline_mode<synchronous>, transform_indices = @transform_1, window_bounds = array<i64: 3, 64, 128>}, {pipeline_mode = #tpu.pipeline_mode<synchronous>, transform_indices = @transform_2, window_bounds = array<i64: 1, 128>}, {transform_indices = @transform_3, window_bounds = array<i64: 1, 16, 128>}, {pipeline_mode = #tpu.pipeline_mode<synchronous>, transform_indices = @transform_4, window_bounds = array<i64: 1, 128>}, {pipeline_mode = #tpu.pipeline_mode<synchronous>, transform_indices = @transform_5, window_bounds = array<i64: 1, 128>}]} {
    %c0_i32 = arith.constant 0 : i32
    %0 = arith.cmpi eq, %arg0, %c0_i32 : i32
    %1 = arith.extui %0 : i1 to i32
    %c0_i32_0 = arith.constant 0 : i32
    %2 = arith.cmpi ne, %1, %c0_i32_0 : i32
    scf.if %2 {
      %cst_38 = arith.constant 0.000000e+00 : f32
      %46 = vector.broadcast %cst_38 : f32 to vector<1x64xf32>
      %c0_39 = arith.constant 0 : index
      %c0_40 = arith.constant 0 : index
      %47 = vector.load %arg7[%c0_39, %c0_40] : memref<18x64xf32, #tpu.memory_space<vmem>>, vector<1x64xf32>
      tpu.vector_store %arg7[%c0_39, %c0_40], %46 {strides = array<i32>} : memref<18x64xf32, #tpu.memory_space<vmem>>, vector<1x64xf32>,
      %cst_41 = arith.constant 0.000000e+00 : f32
      %48 = vector.broadcast %cst_41 : f32 to vector<1x64xf32>
      %c17 = arith.constant 17 : index
      %c0_42 = arith.constant 0 : index
      %49 = vector.load %arg7[%c17, %c0_42] : memref<18x64xf32, #tpu.memory_space<vmem>>, vector<1x64xf32>
      tpu.vector_store %arg7[%c17, %c0_42], %48 {strides = array<i32>} : memref<18x64xf32, #tpu.memory_space<vmem>>, vector<1x64xf32>,
      %cst_43 = arith.constant 0.000000e+00 : f32
      %50 = vector.broadcast %cst_43 : f32 to vector<1x128xf32>
      %c0_44 = arith.constant 0 : index
      %c0_45 = arith.constant 0 : index
      %51 = vector.load %arg5[%c0_44, %c0_45] : memref<1x128xf32, #tpu.memory_space<vmem>>, vector<1x128xf32>
      tpu.vector_store %arg5[%c0_44, %c0_45], %50 {strides = array<i32>} : memref<1x128xf32, #tpu.memory_space<vmem>>, vector<1x128xf32>,
      %cst_46 = arith.constant 0.000000e+00 : f32
      %52 = vector.broadcast %cst_46 : f32 to vector<1x128xf32>
      %c0_47 = arith.constant 0 : index
      %c0_48 = arith.constant 0 : index
      %53 = vector.load %arg6[%c0_47, %c0_48] : memref<1x128xf32, #tpu.memory_space<vmem>>, vector<1x128xf32>
      tpu.vector_store %arg6[%c0_47, %c0_48], %52 {strides = array<i32>} : memref<1x128xf32, #tpu.memory_space<vmem>>, vector<1x128xf32>,
    } else {
    }
    %c0 = arith.constant 0 : index
    %c0_1 = arith.constant 0 : index
    %c0_2 = arith.constant 0 : index
    %3 = vector.load %arg1[%c0, %c0_1, %c0_2] : memref<1x16x64xf32, #tpu.memory_space<vmem>>, vector<1x16x64xf32>
    %4 = vector.shape_cast %3 : vector<1x16x64xf32> to vector<16x64xf32>
    %c1 = arith.constant 1 : index
    %c0_3 = arith.constant 0 : index
    %5 = vector.load %arg7[%c1, %c0_3] : memref<18x64xf32, #tpu.memory_space<vmem>>, vector<16x64xf32>
    tpu.vector_store %arg7[%c1, %c0_3], %4 {strides = array<i32>} : memref<18x64xf32, #tpu.memory_space<vmem>>, vector<16x64xf32>,
    %cst = arith.constant 0.000000e+00 : f32
    %6 = vector.broadcast %cst : f32 to vector<16x128xf32>
    %c0_4 = arith.constant 0 : index
    %c0_5 = arith.constant 0 : index
    %7 = vector.load %arg7[%c0_4, %c0_5] : memref<18x64xf32, #tpu.memory_space<vmem>>, vector<16x64xf32>
    %8 = arith.truncf %7 : vector<16x64xf32> to vector<16x64xbf16>
    %c0_6 = arith.constant 0 : index
    %c0_7 = arith.constant 0 : index
    %c0_8 = arith.constant 0 : index
    %9 = vector.load %arg2[%c0_6, %c0_7, %c0_8] : memref<3x64x128xbf16, #tpu.memory_space<vmem>>, vector<1x64x128xbf16>
    %10 = vector.shape_cast %9 : vector<1x64x128xbf16> to vector<64x128xbf16>
    %cst_9 = arith.constant dense<0.000000e+00> : vector<16x128xf32>
    %11 = tpu.matmul %8, %10, %cst_9 {dimension_numbers = #tpu.dot_dimension_numbers<[1], [0], [0], [1], [0, 0, 1, 1], [], []>} : vector<16x64xbf16>, vector<64x128xbf16>, vector<16x128xf32> -> vector<16x128xf32>
    %12 = arith.addf %6, %11 : vector<16x128xf32>
    %c1_10 = arith.constant 1 : index
    %c0_11 = arith.constant 0 : index
    %13 = vector.load %arg7[%c1_10, %c0_11] : memref<18x64xf32, #tpu.memory_space<vmem>>, vector<16x64xf32>
    %14 = arith.truncf %13 : vector<16x64xf32> to vector<16x64xbf16>
    %c1_12 = arith.constant 1 : index
    %c0_13 = arith.constant 0 : index
    %c0_14 = arith.constant 0 : index
    %15 = vector.load %arg2[%c1_12, %c0_13, %c0_14] : memref<3x64x128xbf16, #tpu.memory_space<vmem>>, vector<1x64x128xbf16>
    %16 = vector.shape_cast %15 : vector<1x64x128xbf16> to vector<64x128xbf16>
    %cst_15 = arith.constant dense<0.000000e+00> : vector<16x128xf32>
    %17 = tpu.matmul %14, %16, %cst_15 {dimension_numbers = #tpu.dot_dimension_numbers<[1], [0], [0], [1], [0, 0, 1, 1], [], []>} : vector<16x64xbf16>, vector<64x128xbf16>, vector<16x128xf32> -> vector<16x128xf32>
    %18 = arith.addf %12, %17 : vector<16x128xf32>
    %c2 = arith.constant 2 : index
    %c0_16 = arith.constant 0 : index
    %19 = vector.load %arg7[%c2, %c0_16] : memref<18x64xf32, #tpu.memory_space<vmem>>, vector<16x64xf32>
    %20 = arith.truncf %19 : vector<16x64xf32> to vector<16x64xbf16>
    %c2_17 = arith.constant 2 : index
    %c0_18 = arith.constant 0 : index
    %c0_19 = arith.constant 0 : index
    %21 = vector.load %arg2[%c2_17, %c0_18, %c0_19] : memref<3x64x128xbf16, #tpu.memory_space<vmem>>, vector<1x64x128xbf16>
    %22 = vector.shape_cast %21 : vector<1x64x128xbf16> to vector<64x128xbf16>
    %cst_20 = arith.constant dense<0.000000e+00> : vector<16x128xf32>
    %23 = tpu.matmul %20, %22, %cst_20 {dimension_numbers = #tpu.dot_dimension_numbers<[1], [0], [0], [1], [0, 0, 1, 1], [], []>} : vector<16x64xbf16>, vector<64x128xbf16>, vector<16x128xf32> -> vector<16x128xf32>
    %24 = arith.addf %18, %23 : vector<16x128xf32>
    %c0_21 = arith.constant 0 : index
    %c0_22 = arith.constant 0 : index
    %25 = vector.load %arg3[%c0_21, %c0_22] : memref<1x128xf32, #tpu.memory_space<vmem>>, vector<1x128xf32>
    %26 = vector.broadcast %25 : vector<1x128xf32> to vector<16x128xf32>
    %27 = arith.addf %24, %26 : vector<16x128xf32>
    %cst_23 = arith.constant 0.000000e+00 : f32
    %28 = vector.broadcast %cst_23 : f32 to vector<16x128xf32>
    %29 = arith.cmpf ogt, %27, %28 : vector<16x128xf32>
    %cst_24 = arith.constant 0.00999999977 : f32
    %30 = vector.broadcast %cst_24 : f32 to vector<16x128xf32>
    %31 = arith.mulf %30, %27 : vector<16x128xf32>
    %32 = arith.select %29, %27, %31 : vector<16x128xi1>, vector<16x128xf32>
    %33 = vector.shape_cast %32 : vector<16x128xf32> to vector<1x16x128xf32>
    %c0_25 = arith.constant 0 : index
    %c0_26 = arith.constant 0 : index
    %c0_27 = arith.constant 0 : index
    %34 = vector.load %arg4[%c0_25, %c0_26, %c0_27] : memref<1x16x128xf32, #tpu.memory_space<vmem>>, vector<1x16x128xf32>
    tpu.vector_store %arg4[%c0_25, %c0_26, %c0_27], %33 {strides = array<i32>} : memref<1x16x128xf32, #tpu.memory_space<vmem>>, vector<1x16x128xf32>,
    %c0_28 = arith.constant 0 : index
    %c0_29 = arith.constant 0 : index
    %35 = vector.load %arg5[%c0_28, %c0_29] : memref<1x128xf32, #tpu.memory_space<vmem>>, vector<1x128xf32>
    %cst_30 = arith.constant dense<0.000000e+00> : vector<128xf32>
    %36 = vector.multi_reduction <add>, %32, %cst_30 [0] : vector<16x128xf32> to vector<128xf32>
    %37 = vector.shape_cast %36 : vector<128xf32> to vector<1x128xf32>
    %38 = arith.addf %35, %37 : vector<1x128xf32>
    %c0_31 = arith.constant 0 : index
    %c0_32 = arith.constant 0 : index
    %39 = vector.load %arg5[%c0_31, %c0_32] : memref<1x128xf32, #tpu.memory_space<vmem>>, vector<1x128xf32>
    tpu.vector_store %arg5[%c0_31, %c0_32], %38 {strides = array<i32>} : memref<1x128xf32, #tpu.memory_space<vmem>>, vector<1x128xf32>,
    %c0_33 = arith.constant 0 : index
    %c0_34 = arith.constant 0 : index
    %40 = vector.load %arg6[%c0_33, %c0_34] : memref<1x128xf32, #tpu.memory_space<vmem>>, vector<1x128xf32>
    %41 = arith.mulf %32, %32 : vector<16x128xf32>
    %cst_35 = arith.constant dense<0.000000e+00> : vector<128xf32>
    %42 = vector.multi_reduction <add>, %41, %cst_35 [0] : vector<16x128xf32> to vector<128xf32>
    %43 = vector.shape_cast %42 : vector<128xf32> to vector<1x128xf32>
    %44 = arith.addf %40, %43 : vector<1x128xf32>
    %c0_36 = arith.constant 0 : index
    %c0_37 = arith.constant 0 : index
    %45 = vector.load %arg6[%c0_36, %c0_37] : memref<1x128xf32, #tpu.memory_space<vmem>>, vector<1x128xf32>
    tpu.vector_store %arg6[%c0_36, %c0_37], %44 {strides = array<i32>} : memref<1x128xf32, #tpu.memory_space<vmem>>, vector<1x128xf32>,
    return
  }
  func.func @transform_0(%arg0: i32) -> (i32, i32, i32) {
    %c0_i32 = arith.constant 0 : i32
    %c0_i32_0 = arith.constant 0 : i32
    %c0_i32_1 = arith.constant 0 : i32
    return %arg0, %c0_i32, %c0_i32_0 : i32, i32, i32
  }
  func.func @transform_1(%arg0: i32) -> (i32, i32, i32) {
    %c0_i32 = arith.constant 0 : i32
    %c0_i32_0 = arith.constant 0 : i32
    %c0_i32_1 = arith.constant 0 : i32
    %c0_i32_2 = arith.constant 0 : i32
    return %c0_i32, %c0_i32_0, %c0_i32_1 : i32, i32, i32
  }
  func.func @transform_2(%arg0: i32) -> (i32, i32) {
    %c0_i32 = arith.constant 0 : i32
    %c0_i32_0 = arith.constant 0 : i32
    %c0_i32_1 = arith.constant 0 : i32
    return %c0_i32, %c0_i32_0 : i32, i32
  }
  func.func @transform_3(%arg0: i32) -> (i32, i32, i32) {
    %c0_i32 = arith.constant 0 : i32
    %c0_i32_0 = arith.constant 0 : i32
    %c0_i32_1 = arith.constant 0 : i32
    return %arg0, %c0_i32, %c0_i32_0 : i32, i32, i32
  }
  func.func @transform_4(%arg0: i32) -> (i32, i32) {
    %c0_i32 = arith.constant 0 : i32
    %c0_i32_0 = arith.constant 0 : i32
    %c0_i32_1 = arith.constant 0 : i32
    return %c0_i32, %c0_i32_0 : i32, i32
  }
  func.func @transform_5(%arg0: i32) -> (i32, i32) {
    %c0_i32 = arith.constant 0 : i32
    %c0_i32_0 = arith.constant 0 : i32
    %c0_i32_1 = arith.constant 0 : i32
    return %c0_i32, %c0_i32_0 : i32, i32
  }
}

</mosaic_0001>

<llo_original>
// kernel: tpu_custom_call.1
$region0: #{tpu_custom_call.1}
  #allocation0 [shape = 'u32[]', space=smem, size = 0x4, offset = 0x4, fixed_abs, tag = 'smem constant byte address 0x4 - core index']
  #allocation1 [shape = 'u32[144,128]{1,0:T(1,128)}', space=vmem, size = 0x12000, scoped, tag = 'internal scratch']
  #allocation2 [shape = 'f32[18,64]{1,0:T(8,128)}', space=vmem, size = 0x3000, scoped, tag = 'scratch operand']
  %s0 = inlined_call_operand.hbm [shape: f32[2,16,64], index: 0, kind: input, shape index: {}]
  %s1 = inlined_call_operand.hbm [shape: bf16[3,64,128], index: 1, kind: input, shape index: {}]
  %s2 = inlined_call_operand.vmem [shape: f32[1,128], index: 2, kind: input, shape index: {}]
  %s3 = inlined_call_operand.hbm [shape: f32[2,16,128], index: 3, kind: output, shape index: {0}]
  %s4 = inlined_call_operand.hbm [shape: f32[1,128], index: 4, kind: output, shape index: {1}]
  %s5 = inlined_call_operand.hbm [shape: f32[1,128], index: 5, kind: output, shape index: {2}]
  %6 = xla_tuple %s3, %s4, %s5
  %s7 = sld [smem:[#allocation0]]
  $region73: #{tpu_custom_call.1} parent=0
    _
  %s9 = ssub.s32 1, %s7
  %s10 = scalar_select 0, %s9, %s7
  $region1: #{tpu_custom_call.1} parent=0
    #allocation3 [shape = 'u8[16384]{0}', space=vmem, size = 0x4000, scoped, tag = 'input window, operand 0']
    #allocation4 [shape = 's32[2]{0}', space=sflag, size = 0x8, scoped, tag = 'scoped memory for tpu_custom_call.1']
    #allocation5 [shape = 's32[2]{0}', space=sflag, size = 0x8, scoped, tag = 'scoped memory for tpu_custom_call.1']
    #allocation6 [shape = 'u8[49152]{0}', space=vmem, size = 0xc000, scoped, tag = 'input window, operand 1, single buffered']
    #allocation7 [shape = 's32[1]{0}', space=sflag, size = 0x4, scoped, tag = 'scoped memory for tpu_custom_call.1']
    #allocation8 [shape = 'u8[16384]{0}', space=vmem, size = 0x4000, scoped, tag = 'output window, operand 0']
    #allocation9 [shape = 'u8[512]{0}', space=vmem, size = 0x400, scoped, tag = 'output window, operand 1, single buffered']
    #allocation10 [shape = 's32[1]{0}', space=sflag, size = 0x4, scoped, tag = 'scoped memory for tpu_custom_call.1']
    #allocation11 [shape = 'u8[512]{0}', space=vmem, size = 0x400, scoped, tag = 'output window, operand 2, single buffered']
    %11 = vsyncpa [#allocation4], 0
    %s12 = scalar_lea.sflag [#allocation4], 1
    %13 = vsyncpa %s12, 0
    %14 = vsyncpa [#allocation7], 0
    %15 = vsyncpa [#allocation5], 0
    %s16 = scalar_lea.sflag [#allocation5], 1
    %17 = vsyncpa %s16, 0
    %18 = vsyncpa [#allocation10], 0
    loop: start=0, step=1, limit=4
    $region2: #{tpu_custom_call.1} parent=1 // loop_pre_header
      _
    $region3: #{tpu_custom_call.1} parent=1 // loop_header
      %s20 = sphi 0, %s24
      %p21 = scmp.ge.s32.totalorder %s20, 4
      %s30 = sphi 0, %s32
      %s33 = sphi 0, %s30
      %s34 = sphi 0, %s33
      %s50 = sphi 0, %s34
      %s54 = sphi 0, %s54
      %s56 = sphi 0, %s54
      %s57 = sphi 0, %s56
      %s71 = sphi 0, %s57
      %s75 = sphi 0, %s75
      %s77 = sphi 0, %s75
      %s78 = sphi 0, %s77
      %s92 = sphi 0, %s78
      %s98 = sphi 0, %s100
      %s101 = sphi 0, %s98
      %s102 = sphi 0, %s101
      %s118 = sphi 0, %s102
      %s122 = sphi 0, %s122
      %s124 = sphi 0, %s122
      %s125 = sphi 0, %s124
      %s139 = sphi 0, %s125
      %s143 = sphi 0, %s143
      %s145 = sphi 0, %s143
      %s146 = sphi 0, %s145
      %s160 = sphi 0, %s146
    $region4: #{tpu_custom_call.1} parent=1 // loop_header_branch
      %23 = sbr.rel (%p21) target = $region8
    $region5: #{tpu_custom_call.1} parent=1 // loop_body
      %s25 = ssub.s32 %s20, 1
      %s26 = ssub.s32 %s20, 2
      %s27 = sadd.s32 %s20, 1
      %s28 = ssub.s32 %s20, %s27
      %p29 = scmp.eq.s32.totalorder %s28, 0
      %s31 = sadd.s32 %s30, 1
      %s32 = scalar_select %p29, %s30, %s31
      %p35 = pneg %p29
      %p36 = scmp.eq.s32.totalorder %s20, 1
      %p37 = por %p35, %p36
      %p38 = scmp.ne.s32.totalorder %s30, %s33
      %p39 = scmp.eq.s32.totalorder %s20, 0
      %p40 = por %p38, %p39
      %p41 = scmp.ne.s32.totalorder %s30, %s33
      %p42 = scmp.eq.s32.totalorder %s25, 1
      %p43 = por %p41, %p42
      %p44 = scmp.ne.s32.totalorder %s33, %s34
      %p45 = scmp.eq.s32.totalorder %s25, 0
      %p46 = por %p44, %p45
      %p47 = scmp.ne.s32.totalorder %s33, %s34
      %p48 = scmp.eq.s32.totalorder %s26, 1
      %p49 = por %p47, %p48
      %p51 = scmp.ne.s32.totalorder %s34, %s50
      %p52 = scmp.eq.s32.totalorder %s26, 0
      %p53 = por %p51, %p52
      %s55 = sadd.s32 %s54, 1
      %p58 = scmp.eq.s32.totalorder %s20, 1
      %p59 = scmp.ne.s32.totalorder %s54, %s56
      %p60 = scmp.eq.s32.totalorder %s20, 0
      %p61 = por %p59, %p60
      %p62 = scmp.ne.s32.totalorder %s54, %s56
      %p63 = scmp.eq.s32.totalorder %s25, 1
      %p64 = por %p62, %p63
      %p65 = scmp.ne.s32.totalorder %s56, %s57
      %p66 = scmp.eq.s32.totalorder %s25, 0
      %p67 = por %p65, %p66
      %p68 = scmp.ne.s32.totalorder %s56, %s57
      %p69 = scmp.eq.s32.totalorder %s26, 1
      %p70 = por %p68, %p69
      %p72 = scmp.ne.s32.totalorder %s57, %s71
      %p73 = scmp.eq.s32.totalorder %s26, 0
      %p74 = por %p72, %p73
      %s76 = sadd.s32 %s75, 1
      %p79 = scmp.eq.s32.totalorder %s20, 1
      %p80 = scmp.ne.s32.totalorder %s75, %s77
      %p81 = scmp.eq.s32.totalorder %s20, 0
      %p82 = por %p80, %p81
      %p83 = scmp.ne.s32.totalorder %s75, %s77
      %p84 = scmp.eq.s32.totalorder %s25, 1
      %p85 = por %p83, %p84
      %p86 = scmp.ne.s32.totalorder %s77, %s78
      %p87 = scmp.eq.s32.totalorder %s25, 0
      %p88 = por %p86, %p87
      %p89 = scmp.ne.s32.totalorder %s77, %s78
      %p90 = scmp.eq.s32.totalorder %s26, 1
      %p91 = por %p89, %p90
      %p93 = scmp.ne.s32.totalorder %s78, %s92
      %p94 = scmp.eq.s32.totalorder %s26, 0
      %p95 = por %p93, %p94
      %s96 = ssub.s32 %s20, %s27
      %p97 = scmp.eq.s32.totalorder %s96, 0
      %s99 = sadd.s32 %s98, 1
      %s100 = scalar_select %p97, %s98, %s99
      %p103 = pneg %p97
      %p104 = scmp.eq.s32.totalorder %s20, 1
      %p105 = por %p103, %p104
      %p106 = scmp.ne.s32.totalorder %s98, %s101
      %p107 = scmp.eq.s32.totalorder %s20, 0
      %p108 = por %p106, %p107
      %p109 = scmp.ne.s32.totalorder %s98, %s101
      %p110 = scmp.eq.s32.totalorder %s25, 1
      %p111 = por %p109, %p110
      %p112 = scmp.ne.s32.totalorder %s101, %s102
      %p113 = scmp.eq.s32.totalorder %s25, 0
      %p114 = por %p112, %p113
      %p115 = scmp.ne.s32.totalorder %s101, %s102
      %p116 = scmp.eq.s32.totalorder %s26, 1
      %p117 = por %p115, %p116
      %p119 = scmp.ne.s32.totalorder %s102, %s118
      %p120 = scmp.eq.s32.totalorder %s26, 0
      %p121 = por %p119, %p120
      %s123 = sadd.s32 %s122, 1
      %p126 = scmp.eq.s32.totalorder %s20, 1
      %p127 = scmp.ne.s32.totalorder %s122, %s124
      %p128 = scmp.eq.s32.totalorder %s20, 0
      %p129 = por %p127, %p128
      %p130 = scmp.ne.s32.totalorder %s122, %s124
      %p131 = scmp.eq.s32.totalorder %s25, 1
      %p132 = por %p130, %p131
      %p133 = scmp.ne.s32.totalorder %s124, %s125
      %p134 = scmp.eq.s32.totalorder %s25, 0
      %p135 = por %p133, %p134
      %p136 = scmp.ne.s32.totalorder %s124, %s125
      %p137 = scmp.eq.s32.totalorder %s26, 1
      %p138 = por %p136, %p137
      %p140 = scmp.ne.s32.totalorder %s125, %s139
      %p141 = scmp.eq.s32.totalorder %s26, 0
      %p142 = por %p140, %p141
      %s144 = sadd.s32 %s143, 1
      %p147 = scmp.eq.s32.totalorder %s20, 1
      %p148 = scmp.ne.s32.totalorder %s143, %s145
      %p149 = scmp.eq.s32.totalorder %s20, 0
      %p150 = por %p148, %p149
      %p151 = scmp.ne.s32.totalorder %s143, %s145
      %p152 = scmp.eq.s32.totalorder %s25, 1
      %p153 = por %p151, %p152
      %p154 = scmp.ne.s32.totalorder %s145, %s146
      %p155 = scmp.eq.s32.totalorder %s25, 0
      %p156 = por %p154, %p155
      %p157 = scmp.ne.s32.totalorder %s145, %s146
      %p158 = scmp.eq.s32.totalorder %s26, 1
      %p159 = por %p157, %p158
      %p161 = scmp.ne.s32.totalorder %s146, %s160
      %p162 = scmp.eq.s32.totalorder %s26, 0
      %p163 = por %p161, %p162
      %p164 = scmp.le.s32.totalorder 1, %s20
      %p165 = scmp.lt.s32.totalorder %s20, 3
      %p166 = pnand %p164, %p165
      %p167 = pneg %p166
      // Predicated region
      $region9: #{tpu_custom_call.1} parent=5 // pred_check
        _
      $region10: #{tpu_custom_call.1} parent=5 // pred_check_branch
        %169 = sbr.rel (%p166) target = $region12
      $region11: #{tpu_custom_call.1} parent=5 // pred_region
        %s170 = ssub.s32 %s20, 1
        // Predicated region
        $region13: #{tpu_custom_call.1} parent=11 // pred_check
          %p171 = pneg %p67
        $region14: #{tpu_custom_call.1} parent=11 // pred_check_branch
          %173 = sbr.rel (%p171) target = $region16
        $region15: #{tpu_custom_call.1} parent=11 // pred_region
          %s175 = ssub.s32 1536, 1536
          %176 = vsyncadd [#allocation7], %s175
          %s177 = sshll.u32 [#allocation6], 4
          %s178 = int_to_ptr.vmem [resolvable:$true] %s177
          %183 = dma.hbm_to_vmem [thread:$0]  %s1, 1536, %s178, [#allocation7], 64, 64, 4
        $region16: #{tpu_custom_call.1} parent=11 // pred_fallthru
          _
        // Predicated region
        $region17: #{tpu_custom_call.1} parent=11 // pred_check
          %p184 = pneg %p88
        $region18: #{tpu_custom_call.1} parent=11 // pred_check_branch
          %186 = sbr.rel (%p184) target = $region20
        $region19: #{tpu_custom_call.1} parent=11 // pred_region
          _
        $region20: #{tpu_custom_call.1} parent=11 // pred_fallthru
          _
      $region12: #{tpu_custom_call.1} parent=5 // pred_fallthru
        _
      %p187 = scmp.lt.s32.totalorder %s20, 2
      // Predicated region
      $region21: #{tpu_custom_call.1} parent=5 // pred_check
        %p188 = pneg %p187
      $region22: #{tpu_custom_call.1} parent=5 // pred_check_branch
        %190 = sbr.rel (%p188) target = $region24
      $region23: #{tpu_custom_call.1} parent=5 // pred_region
        // Predicated region
        $region25: #{tpu_custom_call.1} parent=23 // pred_check
          %p191 = pneg %p40
        $region26: #{tpu_custom_call.1} parent=23 // pred_check_branch
          %193 = sbr.rel (%p191) target = $region28
        $region27: #{tpu_custom_call.1} parent=23 // pred_region
          %s194 = sand.u32 %s30, 1
          %s195 = scalar_lea.sflag [#allocation4], %s194
          %s196 = sand.u32 %s30, 1
          %s197 = smul.addr %s196, 16
          %s198 = scalar_lea.vmem [#allocation3], %s197
          %s200 = ssub.s32 256, 256
          %201 = vsyncadd %s195, %s200
          %s202 = smul.addr %s20, 2
          %s203 = smul.addr %s202, 128
          %s204 = scalar_lea.hbm %s0, %s203
          %s205 = sshll.u32 %s198, 4
          %s206 = int_to_ptr.vmem [resolvable:$true] %s205
          %211 = dma.hbm_to_vmem [thread:$0]  %s204, 256, %s206, %s195, 128, 128, 8
        $region28: #{tpu_custom_call.1} parent=23 // pred_fallthru
          _
      $region24: #{tpu_custom_call.1} parent=5 // pred_fallthru
        _
      %p212 = scmp.le.s32.totalorder 1, %s20
      %p213 = scmp.lt.s32.totalorder %s20, 3
      %p214 = pnand %p212, %p213
      %p215 = pneg %p214
      // Predicated region
      $region29: #{tpu_custom_call.1} parent=5 // pred_check
        _
      $region30: #{tpu_custom_call.1} parent=5 // pred_check_branch
        %217 = sbr.rel (%p214) target = $region32
      $region31: #{tpu_custom_call.1} parent=5 // pred_region
        %s218 = ssub.s32 %s20, 1
        %s219 = sand.u32 %s33, 1
        %s220 = scalar_lea.sflag [#allocation4], %s219
        %s221 = sand.u32 %s33, 1
        %s222 = smul.addr %s221, 16
        %s223 = scalar_lea.vmem [#allocation3], %s222
        // Predicated region
        $region33: #{tpu_custom_call.1} parent=31 // pred_check
          %p224 = pneg %p46
        $region34: #{tpu_custom_call.1} parent=31 // pred_check_branch
          %226 = sbr.rel (%p224) target = $region36
        $region35: #{tpu_custom_call.1} parent=31 // pred_region
          %227 = dma.done %s220, 256
        $region36: #{tpu_custom_call.1} parent=31 // pred_fallthru
          _
        // Predicated region
        $region37: #{tpu_custom_call.1} parent=31 // pred_check
          %p228 = pneg %p67
        $region38: #{tpu_custom_call.1} parent=31 // pred_check_branch
          %230 = sbr.rel (%p228) target = $region40
        $region39: #{tpu_custom_call.1} parent=31 // pred_region
          %231 = dma.done [#allocation7], 1536
        $region40: #{tpu_custom_call.1} parent=31 // pred_fallthru
          _
        %s232 = sand.u32 %s33, 1
        %s233 = scalar_lea.sflag [#allocation4], %s232
        %s234 = sand.u32 %s33, 1
        %s235 = smul.addr %s234, 16
        %s236 = scalar_lea.vmem [#allocation3], %s235
        %p237 = pneg %p46
        %p238 = pneg %p43
        %p239 = pneg %p67
        %p240 = pneg %p64
        %p241 = pneg %p88
        %p242 = pneg %p85
        %p243 = pneg %p114
        %p244 = pneg %p111
        %s245 = sand.u32 %s101, 1
        %s246 = scalar_lea.sflag [#allocation5], %s245
        %s247 = sand.u32 %s101, 1
        %s248 = smul.addr %s247, 16
        %s249 = scalar_lea.vmem [#allocation8], %s248
        %p250 = pneg %p135
        %p251 = pneg %p132
        %p252 = pneg %p156
        %p253 = pneg %p153
        %p255 = scmp.eq.s32.totalorder %s25, 0
        // Predicated region
        $region41: #{tpu_custom_call.1} parent=31 // pred_check
          %p256 = pneg %p255
        $region42: #{tpu_custom_call.1} parent=31 // pred_check_branch
          %258 = sbr.rel (%p256) target = $region44
        $region43: #{tpu_custom_call.1} parent=31 // pred_region
          %vm259 = vcmask 516096
          %260 = vst.msk [vmem:[#allocation2] sm:$0x1] %vm259, 0.0
          %261 = vst.msk [vmem:[#allocation2 + $0x11] sm:$0x1] %vm259, 0.0
          %262 = vst [vmem:[#allocation9] sm:$0x1] 0.0
          %263 = vst [vmem:[#allocation11] sm:$0x1] 0.0
        $region44: #{tpu_custom_call.1} parent=31 // pred_fallthru
          _
        %v264 = vld [vmem:[%s223] sm:$0xff]
        %v265 = vld [vmem:[%s223 + $0x8] sm:$0xff]
        %vm266 = vcmask 523264
        %267 = vst.msk [vmem:[#allocation2 + $0x1] sm:$0xff] %vm266, %v264
        %268 = vst.msk [vmem:[#allocation2 + $0x9] sm:$0xff] %vm266, %v265
        %v269 = vld [vmem:[#allocation2] sm:$0xff]
        %v270 = vld [vmem:[#allocation2 + $0x8] sm:$0xff]
        %v271 = vpack.c.bf16 %v270, %v269
        %v272 = vld [vmem:[#allocation6] sm:$0xf]
        %v273 = vld [vmem:[#allocation6 + $0x4] sm:$0xf]
        %v274 = vld [vmem:[#allocation6 + $0x8] sm:$0xf]
        %v275 = vld [vmem:[#allocation6 + $0xc] sm:$0xf]
        %v276 = vld [vmem:[#allocation6 + $0x10] sm:$0xf]
        %v277 = vld [vmem:[#allocation6 + $0x14] sm:$0xf]
        %v278 = vld [vmem:[#allocation6 + $0x18] sm:$0xf]
        %v279 = vld [vmem:[#allocation6 + $0x1c] sm:$0xf]
        %v280 = vld [vmem:[#allocation2 + $0x1] sm:$0xff]
        %v281 = vld [vmem:[#allocation2 + $0x9] sm:$0xff]
        %v282 = vpack.c.bf16 %v281, %v280
        %s283 = scalar_lea.vmem [#allocation6], 32
        %v284 = vld [vmem:[%s283] sm:$0xf]
        %v285 = vld [vmem:[%s283 + $0x4] sm:$0xf]
        %v286 = vld [vmem:[%s283 + $0x8] sm:$0xf]
        %v287 = vld [vmem:[%s283 + $0xc] sm:$0xf]
        %v288 = vld [vmem:[%s283 + $0x10] sm:$0xf]
        %v289 = vld [vmem:[%s283 + $0x14] sm:$0xf]
        %v290 = vld [vmem:[%s283 + $0x18] sm:$0xf]
        %v291 = vld [vmem:[%s283 + $0x1c] sm:$0xf]
        %v300 = vunpack.c.l.b16 %v284
        %v301 = vunpack.c.l.b16 %v285
        %v302 = vunpack.c.l.b16 %v286
        %v303 = vunpack.c.l.b16 %v287
        %v304 = vunpack.c.l.b16 %v288
        %v305 = vunpack.c.l.b16 %v289
        %v306 = vunpack.c.l.b16 %v290
        %v307 = vunpack.c.l.b16 %v291
        %v308 = vpack.c.b16 %v301, %v300
        %v309 = vpack.c.b16 %v303, %v302
        %v310 = vpack.c.b16 %v305, %v304
        %v311 = vpack.c.b16 %v307, %v306
        %v317 = vsel %vm266, %v282, 0
        %319 = vmatprep.subr.bf16.mxu0 0
        %320 = vmatpush1.bf16.msra.mxu0 %v308
        %321 = vmatprep.subr.bf16.mxu0 0
        %322 = vmatpush1.bf16.msra.mxu0 %v309
        %323 = vmatprep.subr.bf16.mxu0 0
        %324 = vmatpush1.bf16.msra.mxu0 %v310
        %325 = vmatprep.subr.bf16.mxu0 0
        %326 = vmatpush1.bf16.msra.mxu0 %v311
        %327 = vmatprep.subr.bf16.mxu0 0
        %328 = vmatpush1.bf16.msra.mxu0 0
        %329 = vmatprep.subr.bf16.mxu0 0
        %330 = vmatpush1.bf16.msra.mxu0 0
        %331 = vmatprep.subr.bf16.mxu0 0
        %332 = vmatpush1.bf16.msra.mxu0 0
        %333 = vmatprep.subr.bf16.mxu0 0
        %334 = vmatpush1.bf16.msra.mxu0 0
        %335 = vmatprep.subr.bf16.mxu0 0
        %336 = vmatpush1.bf16.msra.mxu0 0
        %337 = vmatprep.subr.bf16.mxu0 0
        %338 = vmatpush1.bf16.msra.mxu0 0
        %339 = vmatprep.subr.bf16.mxu0 0
        %340 = vmatpush1.bf16.msra.mxu0 0
        %341 = vmatprep.subr.bf16.mxu0 0
        %342 = vmatpush1.bf16.msra.mxu0 0
        %343 = vmatprep.subr.bf16.mxu0 0
        %344 = vmatpush1.bf16.msra.mxu0 0
        %345 = vmatprep.subr.bf16.mxu0 0
        %346 = vmatpush1.bf16.msra.mxu0 0
        %347 = vmatprep.subr.bf16.mxu0 0
        %348 = vmatpush1.bf16.msra.mxu0 0
        %349 = vmatprep.subr.bf16.mxu0 0
        %350 = vmatpush1.bf16.msra.mxu0 0
        %351 = vmatprep.mubr.bf16.mxu0 0
        %352 = vmatmul.mubr.bf16.gmra.mrb[0].mxu0 %v317
        %v353 = vpop.f32.mrb[0].mxu0
        %v354 = vadd.f32 0.0, %v353
        %v355 = vpop.f32.mrb[0].mxu0
        %v356 = vpop.f32.mrb[0].mxu0
        %v357 = vadd.f32 0.0, %v356
        %v358 = vpop.f32.mrb[0].mxu0
        %359 = vdwg.mxu0
        %v368 = vunpack.c.l.b16 %v272
        %v369 = vunpack.c.l.b16 %v273
        %v370 = vunpack.c.l.b16 %v274
        %v371 = vunpack.c.l.b16 %v275
        %v372 = vunpack.c.l.b16 %v276
        %v373 = vunpack.c.l.b16 %v277
        %v374 = vunpack.c.l.b16 %v278
        %v375 = vunpack.c.l.b16 %v279
        %v376 = vpack.c.b16 %v369, %v368
        %v377 = vpack.c.b16 %v371, %v370
        %v378 = vpack.c.b16 %v373, %v372
        %v379 = vpack.c.b16 %v375, %v374
        %v385 = vsel %vm266, %v271, 0
        %387 = vmatprep.subr.bf16.mxu0 0
        %388 = vmatpush1.bf16.msra.mxu0 %v376
        %389 = vmatprep.subr.bf16.mxu0 0
        %390 = vmatpush1.bf16.msra.mxu0 %v377
        %391 = vmatprep.subr.bf16.mxu0 0
        %392 = vmatpush1.bf16.msra.mxu0 %v378
        %393 = vmatprep.subr.bf16.mxu0 0
        %394 = vmatpush1.bf16.msra.mxu0 %v379
        %395 = vmatprep.subr.bf16.mxu0 0
        %396 = vmatpush1.bf16.msra.mxu0 0
        %397 = vmatprep.subr.bf16.mxu0 0
        %398 = vmatpush1.bf16.msra.mxu0 0
        %399 = vmatprep.subr.bf16.mxu0 0
        %400 = vmatpush1.bf16.msra.mxu0 0
        %401 = vmatprep.subr.bf16.mxu0 0
        %402 = vmatpush1.bf16.msra.mxu0 0
        %403 = vmatprep.subr.bf16.mxu0 0
        %404 = vmatpush1.bf16.msra.mxu0 0
        %405 = vmatprep.subr.bf16.mxu0 0
        %406 = vmatpush1.bf16.msra.mxu0 0
        %407 = vmatprep.subr.bf16.mxu0 0
        %408 = vmatpush1.bf16.msra.mxu0 0
        %409 = vmatprep.subr.bf16.mxu0 0
        %410 = vmatpush1.bf16.msra.mxu0 0
        %411 = vmatprep.subr.bf16.mxu0 0
        %412 = vmatpush1.bf16.msra.mxu0 0
        %413 = vmatprep.subr.bf16.mxu0 0
        %414 = vmatpush1.bf16.msra.mxu0 0
        %415 = vmatprep.subr.bf16.mxu0 0
        %416 = vmatpush1.bf16.msra.mxu0 0
        %417 = vmatprep.subr.bf16.mxu0 0
        %418 = vmatpush1.bf16.msra.mxu0 0
        %419 = vmatprep.mubr.bf16.mxu0 0
        %420 = vmatmul.mubr.bf16.gmra.mrb[0].mxu0 %v385
        %v421 = vpop.f32.mrb[0].mxu0
        %v422 = vadd.f32 %v354, %v421
        %v423 = vpop.f32.mrb[0].mxu0
        %v424 = vpop.f32.mrb[0].mxu0
        %v425 = vadd.f32 %v357, %v424
        %v426 = vpop.f32.mrb[0].mxu0
        %427 = vdwg.mxu0
        %v428 = vld [vmem:[#allocation2 + $0x2] sm:$0xff]
        %v429 = vld [vmem:[#allocation2 + $0xa] sm:$0xff]
        %v430 = vpack.c.bf16 %v429, %v428
        %s431 = scalar_lea.vmem [#allocation6], 64
        %v432 = vld [vmem:[%s431] sm:$0xf]
        %v433 = vld [vmem:[%s431 + $0x4] sm:$0xf]
        %v434 = vld [vmem:[%s431 + $0x8] sm:$0xf]
        %v435 = vld [vmem:[%s431 + $0xc] sm:$0xf]
        %v436 = vld [vmem:[%s431 + $0x10] sm:$0xf]
        %v437 = vld [vmem:[%s431 + $0x14] sm:$0xf]
        %v438 = vld [vmem:[%s431 + $0x18] sm:$0xf]
        %v439 = vld [vmem:[%s431 + $0x1c] sm:$0xf]
        %v448 = vunpack.c.l.b16 %v432
        %v449 = vunpack.c.l.b16 %v433
        %v450 = vunpack.c.l.b16 %v434
        %v451 = vunpack.c.l.b16 %v435
        %v452 = vunpack.c.l.b16 %v436
        %v453 = vunpack.c.l.b16 %v437
        %v454 = vunpack.c.l.b16 %v438
        %v455 = vunpack.c.l.b16 %v439
        %v456 = vpack.c.b16 %v449, %v448
        %v457 = vpack.c.b16 %v451, %v450
        %v458 = vpack.c.b16 %v453, %v452
        %v459 = vpack.c.b16 %v455, %v454
        %v465 = vsel %vm266, %v430, 0
        %467 = vmatprep.subr.bf16.mxu0 0
        %468 = vmatpush1.bf16.msra.mxu0 %v456
        %469 = vmatprep.subr.bf16.mxu0 0
        %470 = vmatpush1.bf16.msra.mxu0 %v457
        %471 = vmatprep.subr.bf16.mxu0 0
        %472 = vmatpush1.bf16.msra.mxu0 %v458
        %473 = vmatprep.subr.bf16.mxu0 0
        %474 = vmatpush1.bf16.msra.mxu0 %v459
        %475 = vmatprep.subr.bf16.mxu0 0
        %476 = vmatpush1.bf16.msra.mxu0 0
        %477 = vmatprep.subr.bf16.mxu0 0
        %478 = vmatpush1.bf16.msra.mxu0 0
        %479 = vmatprep.subr.bf16.mxu0 0
        %480 = vmatpush1.bf16.msra.mxu0 0
        %481 = vmatprep.subr.bf16.mxu0 0
        %482 = vmatpush1.bf16.msra.mxu0 0
        %483 = vmatprep.subr.bf16.mxu0 0
        %484 = vmatpush1.bf16.msra.mxu0 0
        %485 = vmatprep.subr.bf16.mxu0 0
        %486 = vmatpush1.bf16.msra.mxu0 0
        %487 = vmatprep.subr.bf16.mxu0 0
        %488 = vmatpush1.bf16.msra.mxu0 0
        %489 = vmatprep.subr.bf16.mxu0 0
        %490 = vmatpush1.bf16.msra.mxu0 0
        %491 = vmatprep.subr.bf16.mxu0 0
        %492 = vmatpush1.bf16.msra.mxu0 0
        %493 = vmatprep.subr.bf16.mxu0 0
        %494 = vmatpush1.bf16.msra.mxu0 0
        %495 = vmatprep.subr.bf16.mxu0 0
        %496 = vmatpush1.bf16.msra.mxu0 0
        %497 = vmatprep.subr.bf16.mxu0 0
        %498 = vmatpush1.bf16.msra.mxu0 0
        %499 = vmatprep.mubr.bf16.mxu0 0
        %500 = vmatmul.mubr.bf16.gmra.mrb[0].mxu0 %v465
        %v501 = vpop.f32.mrb[0].mxu0
        %v502 = vadd.f32 0.0, %v501
        %v503 = vpop.f32.mrb[0].mxu0
        %v504 = vpop.f32.mrb[0].mxu0
        %v505 = vadd.f32 0.0, %v504
        %v506 = vpop.f32.mrb[0].mxu0
        %507 = vdwg.mxu0
        %v508 = vadd.f32 %v422, %v502
        %v509 = vadd.f32 %v425, %v505
        %v510 = vld [vmem:[%s2] sm:$0x1]
        %v512 = vlaneseq
        %v513 = vshrl.u32 %v512, 7
        %v514 = vsub.s32 0, %v513
        %v515 = vrot.slane %v510, %v514
        %v517 = vadd.f32 %v508, %v515
        %v518 = vadd.f32 %v509, %v515
        %vm519 = vcmp.gt.f32.partialorder %v517, 0.0
        %vm520 = vcmp.gt.f32.partialorder %v518, 0.0
        %v521 = vmul.f32 %v517, 0.01
        %v522 = vmul.f32 %v518, 0.01
        %v523 = vsel %vm519, %v517, %v521
        %v524 = vsel %vm520, %v518, %v522
        %525 = vst [vmem:[%s249] sm:$0xff] %v523
        %526 = vst [vmem:[%s249 + $0x8] sm:$0xff] %v524
        %v527 = vld [vmem:[#allocation9] sm:$0x1]
        %v528 = vadd.f32 %v523, %v524
        %v529 = vrot.slane %v528, 4
        %v530 = vadd.f32 %v528, %v529
        %v531 = vrot.slane %v530, 2
        %v532 = vadd.f32 %v530, %v531
        %v533 = vrot.slane %v532, 1
        %v534 = vadd.f32 %v532, %v533
        %v535 = vadd.f32 %v527, %v534
        %536 = vst [vmem:[#allocation9] sm:$0x1] %v535
        %v537 = vld [vmem:[#allocation11] sm:$0x1]
        %v538 = vmul.f32 %v523, %v523
        %v539 = vmul.f32 %v524, %v524
        %v540 = vadd.f32 %v538, %v539
        %v541 = vrot.slane %v540, 4
        %v542 = vadd.f32 %v540, %v541
        %v543 = vrot.slane %v542, 2
        %v544 = vadd.f32 %v542, %v543
        %v545 = vrot.slane %v544, 1
        %v546 = vadd.f32 %v544, %v545
        %v547 = vadd.f32 %v537, %v546
        %548 = vst [vmem:[#allocation11] sm:$0x1] %v547
        %s549 = sand.u32 %s101, 1
        %s550 = scalar_lea.sflag [#allocation5], %s549
        %s551 = sand.u32 %s101, 1
        %s552 = smul.addr %s551, 16
        %s553 = scalar_lea.vmem [#allocation8], %s552
        // Predicated region
        $region45: #{tpu_custom_call.1} parent=31 // pred_check
          %p554 = pneg %p111
        $region46: #{tpu_custom_call.1} parent=31 // pred_check_branch
          %556 = sbr.rel (%p554) target = $region48
        $region47: #{tpu_custom_call.1} parent=31 // pred_region
          %s558 = ssub.s32 256, 256
          %559 = vsyncadd %s550, %s558
          %s560 = smul.addr %s25, 2
          %s561 = smul.addr %s560, 128
          %s562 = scalar_lea.hbm %s3, %s561
          %s563 = sshll.u32 %s553, 4
          %s564 = int_to_ptr.vmem [resolvable:$true] %s563
          %569 = dma.vmem_to_hbm [thread:$0]  %s564, 256, %s562, %s550, 128, 128, 8
        $region48: #{tpu_custom_call.1} parent=31 // pred_fallthru
          _
        // Predicated region
        $region49: #{tpu_custom_call.1} parent=31 // pred_check
          %p570 = pneg %p132
        $region50: #{tpu_custom_call.1} parent=31 // pred_check_branch
          %572 = sbr.rel (%p570) target = $region52
        $region51: #{tpu_custom_call.1} parent=31 // pred_region
          %s574 = ssub.s32 16, 16
          %575 = vsyncadd [#allocation10], %s574
          %s577 = sshll.u32 [#allocation9], 4
          %s578 = int_to_ptr.vmem [resolvable:$true] %s577
          %580 = dma.vmem_to_hbm [thread:$0]  %s578, 16, %s4, [#allocation10]
        $region52: #{tpu_custom_call.1} parent=31 // pred_fallthru
          _
        // Predicated region
        $region53: #{tpu_custom_call.1} parent=31 // pred_check
          %p581 = pneg %p153
        $region54: #{tpu_custom_call.1} parent=31 // pred_check_branch
          %583 = sbr.rel (%p581) target = $region56
        $region55: #{tpu_custom_call.1} parent=31 // pred_region
          %s585 = ssub.s32 16, 16
          %586 = vsyncadd [#allocation10], %s585
          %s588 = sshll.u32 [#allocation11], 4
          %s589 = int_to_ptr.vmem [resolvable:$true] %s588
          %591 = dma.vmem_to_hbm [thread:$0]  %s589, 16, %s5, [#allocation10]
        $region56: #{tpu_custom_call.1} parent=31 // pred_fallthru
          _
        // Predicated region
        $region57: #{tpu_custom_call.1} parent=31 // pred_check
          %p592 = pneg %p132
        $region58: #{tpu_custom_call.1} parent=31 // pred_check_branch
          %594 = sbr.rel (%p592) target = $region60
        $region59: #{tpu_custom_call.1} parent=31 // pred_region
          %595 = dma.done [#allocation10], 16
        $region60: #{tpu_custom_call.1} parent=31 // pred_fallthru
          _
        // Predicated region
        $region61: #{tpu_custom_call.1} parent=31 // pred_check
          %p596 = pneg %p153
        $region62: #{tpu_custom_call.1} parent=31 // pred_check_branch
          %598 = sbr.rel (%p596) target = $region64
        $region63: #{tpu_custom_call.1} parent=31 // pred_region
          %599 = dma.done [#allocation10], 16
        $region64: #{tpu_custom_call.1} parent=31 // pred_fallthru
          _
      $region32: #{tpu_custom_call.1} parent=5 // pred_fallthru
        _
      %p600 = scmp.le.s32.totalorder 2, %s20
      // Predicated region
      $region65: #{tpu_custom_call.1} parent=5 // pred_check
        %p601 = pneg %p600
      $region66: #{tpu_custom_call.1} parent=5 // pred_check_branch
        %603 = sbr.rel (%p601) target = $region68
      $region67: #{tpu_custom_call.1} parent=5 // pred_region
        %s604 = ssub.s32 %s20, 2
        // Predicated region
        $region69: #{tpu_custom_call.1} parent=67 // pred_check
          %p605 = pneg %p117
        $region70: #{tpu_custom_call.1} parent=67 // pred_check_branch
          %607 = sbr.rel (%p605) target = $region72
        $region71: #{tpu_custom_call.1} parent=67 // pred_region
          %s608 = sand.u32 %s102, 1
          %s609 = scalar_lea.sflag [#allocation5], %s608
          %s610 = sand.u32 %s102, 1
          %s611 = smul.addr %s610, 16
          %s612 = scalar_lea.vmem [#allocation8], %s611
          %613 = dma.done %s609, 256
        $region72: #{tpu_custom_call.1} parent=67 // pred_fallthru
          _
      $region68: #{tpu_custom_call.1} parent=5 // pred_fallthru
        _
    $region6: #{tpu_custom_call.1} parent=1 // loop_footer
      %s24 = sadd.s32 1, %s20
    $region7: #{tpu_custom_call.1} parent=1 // loop_footer_branch
      %19 = sbr.rel target = $region3
    $region8: #{tpu_custom_call.1} parent=1 // loop_exit
      _
    %614 = vsyncpa [#allocation4], 1
    %s615 = scalar_lea.sflag [#allocation4], 1
    %616 = vsyncpa %s615, 1
    %617 = vsyncpa [#allocation7], 1
    %618 = vsyncpa [#allocation5], 1
    %s619 = scalar_lea.sflag [#allocation5], 1
    %620 = vsyncpa %s619, 1
    %621 = vsyncpa [#allocation10], 1

</llo_original>
